<compile_context>
chip_gen: v7x
topology: tpu7x:2x2x1
jax: 0.10.0
libtpu: 0.0.40
codegen_flags: <defaults>
</compile_context>

<pallas_src>
import jax
import jax.numpy as jnp
import numpy as np
from jax.experimental import pallas as pl
from jax.experimental.pallas import tpu as pltpu


# ----------------------------------------------------------------------------
# SpectralTransform: the spec module's forward exactly as executed.
# ----------------------------------------------------------------------------
def spectral_transform_forward(x, stride=1):
    """Forward of `SpectralTransform` as the PyTorch module actually executes it.

    The rfftn real/imag stack has 2*in_channels channels while conv1 expects
    in_channels, so Conv3d raises a RuntimeError which forward catches, and the
    module returns self.downsample(x); for stride=1 (Identity) that is x itself.
    """
    if stride == 1:
        return x
    # TODO(synk): the stride==2 except-path (AvgPool3d(2,2) applied twice) is not
    # used by the FFC_3D configuration and is not implemented here.
    raise NotImplementedError("only the stride=1 configuration is implemented")


def _identity_kernel(x_ref, o_ref):
    o_ref[...] = x_ref[...]


def spectral_transform_forward_pallas(x, stride=1):
    """Standalone Pallas version of the executed SpectralTransform forward.

    Stride=1 is an identity, so this is a single lane-dense VMEM copy per batch
    element.  When the module is used inside FFC3DConv the identity is instead
    fused into the out_xg accumulator of the fused kernel below (no copy).
    """
    if stride != 1:
        raise NotImplementedError("only the stride=1 configuration is implemented")
    B, C, D, H, W = x.shape
    HW = H * W
    xr = x.reshape(B, C, D, HW)  # free reshape: merge contiguous trailing dims
    out = pl.pallas_call(
        _identity_kernel,
        out_shape=jax.ShapeDtypeStruct((B, C, D, HW), x.dtype),
        grid=(B,),
        in_specs=[pl.BlockSpec((None, C, D, HW), lambda b: (b, 0, 0, 0))],
        out_specs=pl.BlockSpec((None, C, D, HW), lambda b: (b, 0, 0, 0)),
        compiler_params=pltpu.CompilerParams(dimension_semantics=("parallel",)),
    )(xr)
    return out.reshape(B, C, D, H, W)


# ----------------------------------------------------------------------------
# Fused FFC3DConv forward kernel: per grid step (one batch element)
#   out_xl[co] = sum_ci l2l[co,ci]*x_l[ci] + sum_ci g2l[co,ci]*x_g[ci]
#   out_xg[co] = sum_ci l2g[co,ci]*x_l[ci] + x_g[co]   (spectral identity)
# for a 3x3x3 / stride 1 / pad 1 conv, computed on (D, H*W) channel planes.
# ----------------------------------------------------------------------------
def _make_ffc_fused_kernel(D, H, W, in_cl, in_cg, out_cl, out_cg):
    HW = H * W
    n_in = in_cl + in_cg

    def kernel(wll_ref, wgl_ref, wlg_ref, xl_ref, xg_ref, oxl_ref, oxg_ref):
        f32 = jnp.float32

        # ---- halo edge masks, hoisted: computed once, reused by every channel
        # and every tap (in-kernel replacement for a wrapper-side jnp.pad). ----
        d_idx = jax.lax.broadcasted_iota(jnp.int32, (D, HW), 0)
        q_idx = jax.lax.broadcasted_iota(jnp.int32, (D, HW), 1)
        h_idx = q_idx // W
        w_idx = q_idx % W

        d_mask = {-1: d_idx >= 1, 0: None, 1: d_idx < D - 1}
        hw_mask = {}
        for kh in (-1, 0, 1):
            for kw in (-1, 0, 1):
                m = None
                if kh > 0:
                    m = h_idx < H - kh
                elif kh < 0:
                    m = h_idx >= -kh
                if kw > 0:
                    mw = w_idx < W - kw
                    m = mw if m is None else (m & mw)
                elif kw < 0:
                    mw = w_idx >= -kw
                    m = mw if m is None else (m & mw)
                hw_mask[(kh, kw)] = m

        # Load every input channel once as a (D, H*W) f32 plane
        # (exactly one vreg when H*W == 128).  Order: [x_l..., x_g...].
        x_ch = [xl_ref[c].astype(f32) for c in range(in_cl)]
        x_ch += [xg_ref[c].astype(f32) for c in range(in_cg)]

        # d-direction taps: three sublane-rolled, edge-masked copies per input
        # channel, computed once and reused by all nine (kh, kw) taps.
        def shift_d(plane, kd):
            if kd == 0:
                return plane
            rolled = pltpu.roll(plane, shift=(-kd) % D, axis=0)
            return jnp.where(d_mask[kd], rolled, 0.0)

        x_d = [[shift_d(plane, kd) for kd in (-1, 0, 1)] for plane in x_ch]

        # (kh, kw) taps: one lane roll over the flattened H*W axis + edge mask.
        # For valid output positions q + (kh*W + kw) never wraps, so roll
        # wrap-around only lands on positions the mask zeroes anyway.
        def shift_hw(plane, kh, kw):
            s = kh * W + kw
            if s != 0:
                plane = pltpu.roll(plane, shift=(-s) % HW, axis=1)
            m = hw_mask[(kh, kw)]
            if m is not None:
                plane = jnp.where(m, plane, 0.0)
            return plane

        # fp32 accumulators: one vreg per output channel.  out_xg starts from
        # the SpectralTransform identity residual (stride=1 g->g branch).
        acc_xl = [jnp.zeros((D, HW), f32) for _ in range(out_cl)]
        acc_xg = [x_ch[in_cl + c] for c in range(out_cg)]

        # 27 taps x (in_cl + in_cg) channels, fully unrolled.  Weight scalars
        # are read straight from SMEM (flat OIDHW order) and consumed through
        # the VPU scalar-operand path: no VMEM weight tile, no broadcasts.
        # The contraction deliberately stays on the VPU -- with Cin/Cout in
        # {2,4} the MXU would be <2% utilized.
        for kd in (-1, 0, 1):
            for kh in (-1, 0, 1):
                for kw in (-1, 0, 1):
                    t = (kd + 1) * 9 + (kh + 1) * 3 + (kw + 1)
                    for c in range(n_in):
                        xs = shift_hw(x_d[c][kd + 1], kh, kw)
                        if c < in_cl:
                            ci = c
                            for co in range(out_cl):
                                acc_xl[co] = acc_xl[co] + xs * wll_ref[(co * in_cl + ci) * 27 + t]
                            for co in range(out_cg):
                                acc_xg[co] = acc_xg[co] + xs * wlg_ref[(co * in_cl + ci) * 27 + t]
                        else:
                            ci = c - in_cl
                            for co in range(out_cl):
                                acc_xl[co] = acc_xl[co] + xs * wgl_ref[(co * in_cg + ci) * 27 + t]

        # One dense store per output channel (full 128-lane unmasked vst when
        # H*W == 128; v5e's single store slot sees only out_cl+out_cg stores).
        for co in range(out_cl):
            oxl_ref[co] = acc_xl[co].astype(oxl_ref.dtype)
        for co in range(out_cg):
            oxg_ref[co] = acc_xg[co].astype(oxg_ref.dtype)

    return kernel


def ffc3d_conv_forward(x, params):
    """FFC3DConv forward.  x = (x_l, x_g), both NCDHW; returns an NCDHW tuple."""
    x_l, x_g = x
    B, in_cl, D, H, W = x_l.shape
    in_cg = x_g.shape[1]
    out_cl = params["convl2l"].shape[0]
    out_cg = params["convl2g"].shape[0]
    if out_cg != in_cg:
        # The spectral (g->g) identity residual requires matching channel counts
        # (true for the 4->4, ratio 0.5 configuration).
        raise ValueError(f"out_cg ({out_cg}) must equal in_cg ({in_cg})")
    HW = H * W

    # Free reshapes only: NCDHW -> (B, C, D, H*W) merges contiguous trailing
    # dims (no pad / transpose of activations); weights flatten once into the
    # OIDHW scalar order the kernel indexes.
    xl = x_l.reshape(B, in_cl, D, HW)
    xg = x_g.reshape(B, in_cg, D, HW)
    wll = params["convl2l"].reshape(-1)
    wgl = params["convg2l"].reshape(-1)
    wlg = params["convl2g"].reshape(-1)

    kernel = _make_ffc_fused_kernel(D, H, W, in_cl, in_cg, out_cl, out_cg)
    smem_spec = pl.BlockSpec(memory_space=pltpu.MemorySpace.SMEM)

    out_xl, out_xg = pl.pallas_call(
        kernel,
        out_shape=(
            jax.ShapeDtypeStruct((B, out_cl, D, HW), x_l.dtype),
            jax.ShapeDtypeStruct((B, out_cg, D, HW), x_g.dtype),
        ),
        grid=(B,),
        in_specs=[
            smem_spec,  # convl2l weights, flat f32 scalars in SMEM
            smem_spec,  # convg2l
            smem_spec,  # convl2g
            pl.BlockSpec((None, in_cl, D, HW), lambda b: (b, 0, 0, 0)),
            pl.BlockSpec((None, in_cg, D, HW), lambda b: (b, 0, 0, 0)),
        ],
        out_specs=(
            pl.BlockSpec((None, out_cl, D, HW), lambda b: (b, 0, 0, 0)),
            pl.BlockSpec((None, out_cg, D, HW), lambda b: (b, 0, 0, 0)),
        ),
        # Batch axis is embarrassingly parallel -> both v7x TensorCores get a
        # batch element.  (If B were ever 1, split D into a 2nd parallel axis.)
        compiler_params=pltpu.CompilerParams(dimension_semantics=("parallel",)),
    )(wll, wgl, wlg, xl, xg)

    return (
        out_xl.reshape(B, out_cl, D, H, W),
        out_xg.reshape(B, out_cg, D, H, W),
    )


# ----------------------------------------------------------------------------
# Parameters (deterministic, shapes as in FFC3DConv.__init__)
# ----------------------------------------------------------------------------
def init_ffc3d_params(key, in_channels, out_channels, ratio_gin=0.5, ratio_gout=0.5):
    in_cg = int(in_channels * ratio_gin)
    in_cl = in_channels - in_cg
    out_cg = int(out_channels * ratio_gout)
    out_cl = out_channels - out_cg
    k1, k2, k3 = jax.random.split(key, 3)

    def conv_w(k, cout, cin):
        # PyTorch Conv3d layout (Cout, Cin, kD, kH, kW), kaiming-uniform-like bound.
        bound = 1.0 / float(np.sqrt(cin * 27))
        return jax.random.uniform(k, (cout, cin, 3, 3, 3), jnp.float32, -bound, bound)

    params = {
        "convl2l": conv_w(k1, out_cl, in_cl),
        "convl2g": conv_w(k2, out_cg, in_cl),
        "convg2l": conv_w(k3, out_cl, in_cg),
    }
    # TODO(synk): SpectralTransform's conv1/fu/lfu/conv2/BatchNorm parameters are
    # never exercised (its FFT path raises a caught RuntimeError and the module
    # returns identity for stride=1), so they are intentionally not materialized.
    return params, (in_cl, in_cg, out_cl, out_cg)


# ----------------------------------------------------------------------------
# Pure-JAX reference (for correctness check)
# ----------------------------------------------------------------------------
def _conv3d_ref(x, w):
    return jax.lax.conv_general_dilated(
        x,
        w,
        window_strides=(1, 1, 1),
        padding=((1, 1), (1, 1), (1, 1)),
        dimension_numbers=("NCDHW", "OIDHW", "NCDHW"),
    )


def ffc3d_conv_reference(x, params):
    x_l, x_g = x
    out_xl = _conv3d_ref(x_l, params["convl2l"]) + _conv3d_ref(x_g, params["convg2l"])
    out_xg = _conv3d_ref(x_l, params["convl2g"]) + spectral_transform_forward(x_g)
    return out_xl, out_xg


if __name__ == "__main__":
    key = jax.random.PRNGKey(0)
    # Small shapes consistent with the module; H*W = 128 makes each channel
    # plane exactly one (8,128) f32 vreg inside the kernel (fully lane-dense).
    B, C_IN, C_OUT, D, H, W = 2, 4, 4, 8, 8, 16
    kp, kl, kg = jax.random.split(key, 3)

    params, (in_cl, in_cg, out_cl, out_cg) = init_ffc3d_params(kp, C_IN, C_OUT)
    x_l = jax.random.normal(kl, (B, in_cl, D, H, W), jnp.float32)
    x_g = jax.random.normal(kg, (B, in_cg, D, H, W), jnp.float32)

    # The spec module's own forward (stride=1) is the caught-exception identity:
    # check both the Python statement of that fact and the standalone Pallas copy.
    np.testing.assert_array_equal(
        np.asarray(spectral_transform_forward(x_g)), np.asarray(x_g))
    st_pallas = jax.jit(spectral_transform_forward_pallas)(x_g)
    jax.block_until_ready(st_pallas)
    np.testing.assert_array_equal(np.asarray(st_pallas), np.asarray(x_g))

    out_xl, out_xg = jax.jit(ffc3d_conv_forward)((x_l, x_g), params)
    jax.block_until_ready((out_xl, out_xg))

    ref_xl, ref_xg = ffc3d_conv_reference((x_l, x_g), params)
    np.testing.assert_allclose(np.asarray(out_xl), np.asarray(ref_xl), rtol=1e-4, atol=1e-4)
    np.testing.assert_allclose(np.asarray(out_xg), np.asarray(ref_xg), rtol=1e-4, atol=1e-4)
    assert out_xl.shape == (B, out_cl, D, H, W)
    assert out_xg.shape == (B, out_cg, D, H, W)

    print("KERNEL_OK")
</pallas_src>

<mosaic_0001>
module attributes {stable_mosaic.version = 11 : i64} {
  func.func @_identity_kernel(%arg0: i32, %arg1: memref<1x2x8x128xf32, #tpu.memory_space<vmem>>, %arg2: memref<1x2x8x128xf32, #tpu.memory_space<vmem>>) attributes {dimension_semantics = [#tpu.dimension_semantics<parallel>], iteration_bounds = array<i64: 2>, scalar_prefetch = 0 : i64, scratch_operands = 0 : i64, tpu.core_type = #tpu.core_type<tc>, window_params = [{transform_indices = @transform_0, window_bounds = array<i64: 1, 2, 8, 128>}, {transform_indices = @transform_1, window_bounds = array<i64: 1, 2, 8, 128>}]} {
    %c0 = arith.constant 0 : index
    %c0_0 = arith.constant 0 : index
    %c0_1 = arith.constant 0 : index
    %c0_2 = arith.constant 0 : index
    %0 = vector.load %arg1[%c0, %c0_0, %c0_1, %c0_2] : memref<1x2x8x128xf32, #tpu.memory_space<vmem>>, vector<1x2x8x128xf32>
    %1 = vector.shape_cast %0 : vector<1x2x8x128xf32> to vector<2x8x128xf32>
    %c0_3 = arith.constant 0 : index
    %c0_4 = arith.constant 0 : index
    %c0_5 = arith.constant 0 : index
    %c0_6 = arith.constant 0 : index
    %2 = vector.load %arg2[%c0_3, %c0_4, %c0_5, %c0_6] : memref<1x2x8x128xf32, #tpu.memory_space<vmem>>, vector<1x2x8x128xf32>
    %3 = vector.shape_cast %2 : vector<1x2x8x128xf32> to vector<2x8x128xf32>
    %4 = vector.shape_cast %1 : vector<2x8x128xf32> to vector<1x2x8x128xf32>
    tpu.vector_store %arg2[%c0_3, %c0_4, %c0_5, %c0_6], %4 {strides = array<i32>} : memref<1x2x8x128xf32, #tpu.memory_space<vmem>>, vector<1x2x8x128xf32>,
    return
  }
  func.func @transform_0(%arg0: i32) -> (i32, i32, i32, i32) {
    %c0_i32 = arith.constant 0 : i32
    %c0_i32_0 = arith.constant 0 : i32
    %c0_i32_1 = arith.constant 0 : i32
    %c0_i32_2 = arith.constant 0 : i32
    return %arg0, %c0_i32, %c0_i32_0, %c0_i32_1 : i32, i32, i32, i32
  }
  func.func @transform_1(%arg0: i32) -> (i32, i32, i32, i32) {
    %c0_i32 = arith.constant 0 : i32
    %c0_i32_0 = arith.constant 0 : i32
    %c0_i32_1 = arith.constant 0 : i32
    %c0_i32_2 = arith.constant 0 : i32
    return %arg0, %c0_i32, %c0_i32_0, %c0_i32_1 : i32, i32, i32, i32
  }
}

</mosaic_0001>

<llo_original>
// kernel: spectral_transform_forward_pallas.1
$region0: #{spectral_transform_forward_pallas.1}
  #allocation0 [shape = 'u32[]', space=smem, size = 0x4, offset = 0x4, fixed_abs, tag = 'smem constant byte address 0x4 - core index']
  #allocation1 [shape = 'u32[144,128]{1,0:T(1,128)}', space=vmem, size = 0x12000, scoped, tag = 'internal scratch']
  %s0 = inlined_call_operand.vmem [shape: f32[2,2,8,128], index: 0, kind: input, shape index: {}]
  %s1 = inlined_call_operand.vmem [shape: f32[2,2,8,128], index: 1, kind: output, shape index: {}]
  %s2 = sld [smem:[#allocation0]]
  $region37: #{spectral_transform_forward_pallas.1} parent=0
    _
  %s4 = ssub.s32 1, %s2
  %s5 = scalar_select 0, %s4, %s2
  loop: start=0, step=1, limit=4
  $region2: #{spectral_transform_forward_pallas.1} parent=0 // loop_pre_header
    _
  $region3: #{spectral_transform_forward_pallas.1} parent=0 // loop_header
    %s7 = sphi 0, %s11
    %p8 = scmp.ge.s32.totalorder %s7, 4
    %s17 = sphi 0, %s19
    %s20 = sphi 0, %s17
    %s21 = sphi 0, %s20
    %s37 = sphi 0, %s21
    %s43 = sphi 0, %s45
    %s46 = sphi 0, %s43
    %s47 = sphi 0, %s46
    %s63 = sphi 0, %s47
  $region4: #{spectral_transform_forward_pallas.1} parent=0 // loop_header_branch
    %10 = sbr.rel (%p8) target = $region8
  $region5: #{spectral_transform_forward_pallas.1} parent=0 // loop_body
    %s12 = ssub.s32 %s7, 1
    %s13 = ssub.s32 %s7, 2
    %s14 = sadd.s32 %s7, 1
    %s15 = ssub.s32 %s7, %s14
    %p16 = scmp.eq.s32.totalorder %s15, 0
    %s18 = sadd.s32 %s17, 1
    %s19 = scalar_select %p16, %s17, %s18
    %p22 = pneg %p16
    %p23 = scmp.eq.s32.totalorder %s7, 1
    %p24 = por %p22, %p23
    %p25 = scmp.ne.s32.totalorder %s17, %s20
    %p26 = scmp.eq.s32.totalorder %s7, 0
    %p27 = por %p25, %p26
    %p28 = scmp.ne.s32.totalorder %s17, %s20
    %p29 = scmp.eq.s32.totalorder %s12, 1
    %p30 = por %p28, %p29
    %p31 = scmp.ne.s32.totalorder %s20, %s21
    %p32 = scmp.eq.s32.totalorder %s12, 0
    %p33 = por %p31, %p32
    %p34 = scmp.ne.s32.totalorder %s20, %s21
    %p35 = scmp.eq.s32.totalorder %s13, 1
    %p36 = por %p34, %p35
    %p38 = scmp.ne.s32.totalorder %s21, %s37
    %p39 = scmp.eq.s32.totalorder %s13, 0
    %p40 = por %p38, %p39
    %s41 = ssub.s32 %s7, %s14
    %p42 = scmp.eq.s32.totalorder %s41, 0
    %s44 = sadd.s32 %s43, 1
    %s45 = scalar_select %p42, %s43, %s44
    %p48 = pneg %p42
    %p49 = scmp.eq.s32.totalorder %s7, 1
    %p50 = por %p48, %p49
    %p51 = scmp.ne.s32.totalorder %s43, %s46
    %p52 = scmp.eq.s32.totalorder %s7, 0
    %p53 = por %p51, %p52
    %p54 = scmp.ne.s32.totalorder %s43, %s46
    %p55 = scmp.eq.s32.totalorder %s12, 1
    %p56 = por %p54, %p55
    %p57 = scmp.ne.s32.totalorder %s46, %s47
    %p58 = scmp.eq.s32.totalorder %s12, 0
    %p59 = por %p57, %p58
    %p60 = scmp.ne.s32.totalorder %s46, %s47
    %p61 = scmp.eq.s32.totalorder %s13, 1
    %p62 = por %p60, %p61
    %p64 = scmp.ne.s32.totalorder %s47, %s63
    %p65 = scmp.eq.s32.totalorder %s13, 0
    %p66 = por %p64, %p65
    %p67 = scmp.le.s32.totalorder 1, %s7
    %p68 = scmp.lt.s32.totalorder %s7, 3
    %p69 = pnand %p67, %p68
    %p70 = pneg %p69
    // Predicated region
    $region9: #{spectral_transform_forward_pallas.1} parent=5 // pred_check
      _
    $region10: #{spectral_transform_forward_pallas.1} parent=5 // pred_check_branch
      %72 = sbr.rel (%p69) target = $region12
    $region11: #{spectral_transform_forward_pallas.1} parent=5 // pred_region
      %s73 = ssub.s32 %s7, 1
    $region12: #{spectral_transform_forward_pallas.1} parent=5 // pred_fallthru
      _
    %p74 = scmp.lt.s32.totalorder %s7, 2
    // Predicated region
    $region13: #{spectral_transform_forward_pallas.1} parent=5 // pred_check
      %p75 = pneg %p74
    $region14: #{spectral_transform_forward_pallas.1} parent=5 // pred_check_branch
      %77 = sbr.rel (%p75) target = $region16
    $region15: #{spectral_transform_forward_pallas.1} parent=5 // pred_region
      // Predicated region
      $region17: #{spectral_transform_forward_pallas.1} parent=15 // pred_check
        %p78 = pneg %p27
      $region18: #{spectral_transform_forward_pallas.1} parent=15 // pred_check_branch
        %80 = sbr.rel (%p78) target = $region20
      $region19: #{spectral_transform_forward_pallas.1} parent=15 // pred_region
        %p81 = scmp.lt.s32.totalorder %s7, 1
        %s82 = scalar_select %p81, %s7, 1
        %s83 = smul.addr %s82, 2
        %s84 = smul.addr %s83, 8
        %s85 = scalar_lea.vmem %s0, %s84
      $region20: #{spectral_transform_forward_pallas.1} parent=15 // pred_fallthru
        _
    $region16: #{spectral_transform_forward_pallas.1} parent=5 // pred_fallthru
      _
    %p86 = scmp.le.s32.totalorder 1, %s7
    %p87 = scmp.lt.s32.totalorder %s7, 3
    %p88 = pnand %p86, %p87
    %p89 = pneg %p88
    // Predicated region
    $region21: #{spectral_transform_forward_pallas.1} parent=5 // pred_check
      _
    $region22: #{spectral_transform_forward_pallas.1} parent=5 // pred_check_branch
      %91 = sbr.rel (%p88) target = $region24
    $region23: #{spectral_transform_forward_pallas.1} parent=5 // pred_region
      %s92 = ssub.s32 %s7, 1
      %p93 = scmp.lt.s32.totalorder %s12, 1
      %s94 = scalar_select %p93, %s12, 1
      %s95 = smul.addr %s94, 2
      %s96 = smul.addr %s95, 8
      %s97 = scalar_lea.vmem %s0, %s96
      %p98 = pneg %p33
      %p99 = pneg %p30
      %p100 = pneg %p59
      %p101 = pneg %p56
      %p102 = scmp.lt.s32.totalorder %s12, 1
      %s103 = scalar_select %p102, %s12, 1
      %s104 = smul.addr %s103, 2
      %s105 = smul.addr %s104, 8
      %s106 = scalar_lea.vmem %s1, %s105
      %p107 = scmp.lt.s32.totalorder %s12, 1
      %s108 = scalar_select %p107, %s12, 1
      %s109 = smul.addr %s108, 2
      %s110 = smul.addr %s109, 8
      %s111 = scalar_lea.vmem %s0, %s110
      %p112 = scmp.lt.s32.totalorder %s12, 1
      %s113 = scalar_select %p112, %s12, 1
      %s114 = smul.addr %s113, 2
      %s115 = smul.addr %s114, 8
      %s116 = scalar_lea.vmem %s1, %s115
      %v117 = vld [vmem:[%s111] sm:$0xff]
      %v118 = vld [vmem:[%s111 + $0x8] sm:$0xff]
      %119 = vst [vmem:[%s116] sm:$0xff] %v117
      %120 = vst [vmem:[%s116 + $0x8] sm:$0xff] %v118
      %p121 = scmp.lt.s32.totalorder %s12, 1
      %s122 = scalar_select %p121, %s12, 1
      %s123 = smul.addr %s122, 2
      %s124 = smul.addr %s123, 8
      %s125 = scalar_lea.vmem %s1, %s124
      // Predicated region
      $region25: #{spectral_transform_forward_pallas.1} parent=23 // pred_check
        %p126 = pneg %p56
      $region26: #{spectral_transform_forward_pallas.1} parent=23 // pred_check_branch
        %128 = sbr.rel (%p126) target = $region28
      $region27: #{spectral_transform_forward_pallas.1} parent=23 // pred_region
        _
      $region28: #{spectral_transform_forward_pallas.1} parent=23 // pred_fallthru
        _
    $region24: #{spectral_transform_forward_pallas.1} parent=5 // pred_fallthru
      _
    %p129 = scmp.le.s32.totalorder 2, %s7
    // Predicated region
    $region29: #{spectral_transform_forward_pallas.1} parent=5 // pred_check
      %p130 = pneg %p129
    $region30: #{spectral_transform_forward_pallas.1} parent=5 // pred_check_branch
      %132 = sbr.rel (%p130) target = $region32
    $region31: #{spectral_transform_forward_pallas.1} parent=5 // pred_region
      %s133 = ssub.s32 %s7, 2
      // Predicated region
      $region33: #{spectral_transform_forward_pallas.1} parent=31 // pred_check
        %p134 = pneg %p62
      $region34: #{spectral_transform_forward_pallas.1} parent=31 // pred_check_branch
        %136 = sbr.rel (%p134) target = $region36
      $region35: #{spectral_transform_forward_pallas.1} parent=31 // pred_region
        %p137 = scmp.lt.s32.totalorder %s13, 1
        %s138 = scalar_select %p137, %s13, 1
        %s139 = smul.addr %s138, 2
        %s140 = smul.addr %s139, 8
        %s141 = scalar_lea.vmem %s1, %s140
      $region36: #{spectral_transform_forward_pallas.1} parent=31 // pred_fallthru
        _
    $region32: #{spectral_transform_forward_pallas.1} parent=5 // pred_fallthru
      _
  $region6: #{spectral_transform_forward_pallas.1} parent=0 // loop_footer
    %s11 = sadd.s32 1, %s7
  $region7: #{spectral_transform_forward_pallas.1} parent=0 // loop_footer_branch
    %6 = sbr.rel target = $region3
  $region8: #{spectral_transform_forward_pallas.1} parent=0 // loop_exit
    _

</llo_original>
